<compile_context>
chip_gen: v7x
topology: tpu7x:2x2x1
jax: 0.10.0
libtpu: 0.0.40
codegen_flags: <defaults>
</compile_context>

<pallas_src>
import functools

import jax
import jax.numpy as jnp
from jax.experimental import pallas as pl
from jax.experimental.pallas import tpu as pltpu

LANE = 128      # vreg lane width: interior (hidden) feature dims padded to this
SUBLANE = 8     # sublane granularity for the batch (second-minor) dim

# Once the (padded, cast) weight stack exceeds this, stop double-buffering the
# constant-index weight/bias blocks so the fused design keeps fitting v7x's
# 64 MiB VMEM as hidden widths grow. (Negligible at the tiny test shapes.)
_SINGLE_BUFFER_WEIGHT_BYTES = 8 * 1024 * 1024


def _round_up(x, m):
    return (x + m - 1) // m * m


def _fused_mlp_kernel(x_ref, *refs, num_layers, negative_slope, compute_dtype):
    """Whole Decoder forward for one batch tile.

    refs = (w_0, b_0, w_1, b_1, ..., w_{L-1}, b_{L-1}, o_ref)
      x_ref : [TILE_N, F_in]           compute_dtype  (K left unpadded)
      w_l   : [Fl_pad, F(l+1)_pad]     compute_dtype  (VMEM-resident full blocks)
      b_l   : [1, F(l+1)_pad]          float32
      o_ref : [TILE_N, F_out]          float32        (N left unpadded)
    """
    o_ref = refs[2 * num_layers]
    z = x_ref[...]
    for l in range(num_layers):
        w = refs[2 * l][...]
        b = refs[2 * l + 1][...]
        # MXU matmul with f32 accumulation; bias + LeakyReLU in f32 on the VPU
        # (v5e has no bf16 VPU datapath -> keep elementwise math f32 everywhere).
        y = jnp.dot(z, w, preferred_element_type=jnp.float32) + b
        if l < num_layers - 1:
            y = jnp.where(y >= 0, y, negative_slope * y)     # LeakyReLU(0.01)
            z = y.astype(compute_dtype)                      # bf16 operand for next MXU
        else:
            z = y
    o_ref[...] = z.astype(o_ref.dtype)


def prepare_decoder_params(params, compute_dtype=jnp.bfloat16):
    """One-time prep: pad interior (hidden) dims to 128 lanes, cast matmul operands.

    Call once and reuse the result for every decoder_forward call — this hoists
    all pad/cast XLA ops (and their HBM traffic) out of the forward path.
    params = [(W_l [Fin, Fout], b_l [Fout]), ...]  (W stored input-major).
    """
    cdt = jnp.dtype(compute_dtype)
    num_layers = len(params)
    dims = [params[0][0].shape[0]] + [w.shape[1] for (w, _) in params]
    # Interior activation widths are lane-padded (mathematically inert zeros);
    # the input K and the output N keep their natural sizes so x/out DMA is minimal.
    dims_pad = list(dims)
    for l in range(1, num_layers):
        dims_pad[l] = _round_up(dims[l], LANE)

    weights, biases = [], []
    for l, (w, b) in enumerate(params):
        fi, fo = w.shape
        wp = jnp.zeros((dims_pad[l], dims_pad[l + 1]), cdt)
        wp = wp.at[:fi, :fo].set(w.astype(cdt))
        bp = jnp.zeros((1, dims_pad[l + 1]), jnp.float32)
        bp = bp.at[0, :fo].set(b.astype(jnp.float32))
        weights.append(wp)
        biases.append(bp)
    return {"weights": weights, "biases": biases, "compute_dtype": cdt}


def _choose_batch_tiling(n, tile_n):
    """Pick (n_tile, n_pad, grid_n); aim for >= 2 grid steps (v7x megacore)."""
    n_rows = _round_up(max(n, 1), SUBLANE)
    if n_rows >= 2 * SUBLANE:
        n_tile = min(_round_up(tile_n, SUBLANE),
                     _round_up(pl.cdiv(n_rows, 2), SUBLANE))
    else:
        n_tile = n_rows
    n_pad = _round_up(n_rows, n_tile)
    return n_tile, n_pad, n_pad // n_tile


def decoder_forward(z, prepared, *, negative_slope=0.01, tile_n=1024):
    """Fused Decoder forward. `prepared` = prepare_decoder_params(params, ...)."""
    weights, biases = prepared["weights"], prepared["biases"]
    compute_dtype = prepared["compute_dtype"]
    num_layers = len(weights)
    n, f_in = z.shape
    assert f_in == weights[0].shape[0], "input width mismatch"
    f_out = weights[-1].shape[1]

    n_tile, n_pad, grid_n = _choose_batch_tiling(n, tile_n)

    # Only touch x on the host if we actually need a cast or row padding.
    if n_pad == n and z.dtype == compute_dtype:
        x = z
    else:
        x = jnp.zeros((n_pad, f_in), compute_dtype)
        x = x.at[:n].set(z.astype(compute_dtype))

    wb_bytes = (sum(int(w.size) * w.dtype.itemsize for w in weights)
                + sum(int(b.size) * b.dtype.itemsize for b in biases))
    # Constant-index blocks are fetched only once, but are double-buffered by
    # default; single-buffer them once the stack is big enough to matter (v7x).
    weight_mode = (pl.Buffered(1)
                   if wb_bytes > _SINGLE_BUFFER_WEIGHT_BYTES else None)
    # TODO(synk): if a single layer alone ever exceeds the VMEM budget
    # (hidden >= ~4k bf16), add a K/N-tiled "arbitrary" grid axis for that layer
    # instead of whole-matrix residency.

    in_specs = [pl.BlockSpec((n_tile, f_in), lambda i: (i, 0))]
    operands = [x]
    for w, b in zip(weights, biases):
        in_specs.append(pl.BlockSpec(w.shape, lambda i: (0, 0),
                                     pipeline_mode=weight_mode))
        in_specs.append(pl.BlockSpec(b.shape, lambda i: (0, 0),
                                     pipeline_mode=weight_mode))
        operands += [w, b]

    # Advisory cost: the kernel is HBM/overhead bound, this just helps XLA schedule.
    flops = 2 * n_pad * sum(w.shape[0] * w.shape[1] for w in weights)
    bytes_accessed = (int(x.size) * x.dtype.itemsize + wb_bytes
                      + n_pad * f_out * 4)

    # VMEM budget: io double-buffers + weight stack + headroom for activations.
    cdt_bytes = compute_dtype.itemsize
    max_feat = max([f_in] + [w.shape[1] for w in weights])
    vmem_need = (2 * n_tile * (f_in * cdt_bytes + f_out * 4)
                 + wb_bytes * (1 if weight_mode is not None else 2)
                 + 4 * n_tile * max_feat * 4)
    vmem_limit = min(100 * 1024 * 1024,
                     max(32 * 1024 * 1024, int(1.5 * vmem_need)))

    kernel = functools.partial(
        _fused_mlp_kernel, num_layers=num_layers,
        negative_slope=negative_slope, compute_dtype=compute_dtype)

    y = pl.pallas_call(
        kernel,
        out_shape=jax.ShapeDtypeStruct((n_pad, f_out), jnp.float32),
        grid=(grid_n,),
        in_specs=in_specs,
        out_specs=pl.BlockSpec((n_tile, f_out), lambda i: (i, 0)),
        compiler_params=pltpu.CompilerParams(
            dimension_semantics=("parallel",),   # batch rows are independent
            vmem_limit_bytes=vmem_limit),
        cost_estimate=pl.CostEstimate(flops=flops, transcendentals=0,
                                      bytes_accessed=bytes_accessed),
    )(*operands)

    # Padded rows carry bias-propagated garbage; slice them away (rows only —
    # columns are already at their natural width).
    return y[:n] if n_pad != n else y


def init_decoder_params(key, in_channels, hidden_channels, out_channels,
                        num_layers):
    """Synthetic params matching the PyTorch module shapes; W stored [Fin, Fout]."""
    dims = [in_channels] + [hidden_channels] * (num_layers - 1) + [out_channels]
    params = []
    for i in range(len(dims) - 1):
        key, kw, kb = jax.random.split(key, 3)
        bound = 1.0 / jnp.sqrt(dims[i])   # PyTorch Linear default init range
        w = jax.random.uniform(kw, (dims[i], dims[i + 1]), jnp.float32,
                               minval=-bound, maxval=bound)
        b = jax.random.uniform(kb, (dims[i + 1],), jnp.float32,
                               minval=-bound, maxval=bound)
        params.append((w, b))
    return params


def decoder_reference(z, params, negative_slope=0.01):
    n_layers = len(params)
    for idx, (w, b) in enumerate(params):
        z = z @ w + b
        if idx < n_layers - 1:
            z = jnp.where(z >= 0, z, negative_slope * z)
    return z


if __name__ == "__main__":
    in_channels, hidden_channels, out_channels, num_layers = 16, 32, 8, 4
    batch = 8

    key = jax.random.PRNGKey(0)
    key, kz, kz2 = jax.random.split(key, 3)
    z = jax.random.normal(kz, (batch, in_channels), jnp.float32)
    params = init_decoder_params(key, in_channels, hidden_channels,
                                 out_channels, num_layers)
    ref = decoder_reference(z, params)

    # 1) f32 compute path, tiny batch (single tile) — exact match vs reference.
    prep_f32 = prepare_decoder_params(params, compute_dtype=jnp.float32)
    out = jax.block_until_ready(decoder_forward(z, prep_f32))
    assert out.shape == (batch, out_channels)
    assert jnp.allclose(out, ref, atol=1e-5, rtol=1e-5)

    # 2) Default bf16 matmul-operand path (f32 accumulate/bias/LeakyReLU) —
    #    the recommended v6e/v7x configuration.
    prep_bf16 = prepare_decoder_params(params)          # bf16 is the default
    out_bf16 = jax.block_until_ready(decoder_forward(z, prep_bf16))
    assert out_bf16.shape == (batch, out_channels)
    assert jnp.allclose(out_bf16, ref, atol=5e-2, rtol=5e-2)

    # 3) Larger batch exercising the tiled "parallel" grid, batch-row padding and
    #    the >=2-grid-step (megacore) tiling.
    z_big = jax.random.normal(kz2, (300, in_channels), jnp.float32)
    out_big = jax.block_until_ready(decoder_forward(z_big, prep_f32, tile_n=128))
    ref_big = decoder_reference(z_big, params)
    assert out_big.shape == (300, out_channels)
    assert jnp.allclose(out_big, ref_big, atol=1e-5, rtol=1e-5)

    print("KERNEL_OK")
</pallas_src>

<mosaic_0001>
module attributes {stable_mosaic.version = 11 : i64} {
  func.func @_fused_mlp_kernel(%arg0: i32, %arg1: memref<8x16xf32, #tpu.memory_space<vmem>>, %arg2: memref<16x128xf32, #tpu.memory_space<vmem>>, %arg3: memref<1x128xf32, #tpu.memory_space<vmem>>, %arg4: memref<128x128xf32, #tpu.memory_space<vmem>>, %arg5: memref<1x128xf32, #tpu.memory_space<vmem>>, %arg6: memref<128x128xf32, #tpu.memory_space<vmem>>, %arg7: memref<1x128xf32, #tpu.memory_space<vmem>>, %arg8: memref<128x8xf32, #tpu.memory_space<vmem>>, %arg9: memref<1x8xf32, #tpu.memory_space<vmem>>, %arg10: memref<8x8xf32, #tpu.memory_space<vmem>>) attributes {dimension_semantics = [#tpu.dimension_semantics<parallel>], iteration_bounds = array<i64: 1>, scalar_prefetch = 0 : i64, scratch_operands = 0 : i64, tpu.core_type = #tpu.core_type<tc>, window_params = [{transform_indices = @transform_0, window_bounds = array<i64: 8, 16>}, {pipeline_mode = #tpu.pipeline_mode<synchronous>, transform_indices = @transform_1, window_bounds = array<i64: 16, 128>}, {pipeline_mode = #tpu.pipeline_mode<synchronous>, transform_indices = @transform_2, window_bounds = array<i64: 1, 128>}, {pipeline_mode = #tpu.pipeline_mode<synchronous>, transform_indices = @transform_3, window_bounds = array<i64: 128, 128>}, {pipeline_mode = #tpu.pipeline_mode<synchronous>, transform_indices = @transform_4, window_bounds = array<i64: 1, 128>}, {pipeline_mode = #tpu.pipeline_mode<synchronous>, transform_indices = @transform_5, window_bounds = array<i64: 128, 128>}, {pipeline_mode = #tpu.pipeline_mode<synchronous>, transform_indices = @transform_6, window_bounds = array<i64: 1, 128>}, {pipeline_mode = #tpu.pipeline_mode<synchronous>, transform_indices = @transform_7, window_bounds = array<i64: 128, 8>}, {pipeline_mode = #tpu.pipeline_mode<synchronous>, transform_indices = @transform_8, window_bounds = array<i64: 1, 8>}, {transform_indices = @transform_9, window_bounds = array<i64: 8, 8>}]} {
    %c0 = arith.constant 0 : index
    %c0_0 = arith.constant 0 : index
    %0 = vector.load %arg1[%c0, %c0_0] : memref<8x16xf32, #tpu.memory_space<vmem>>, vector<8x16xf32>
    %c0_1 = arith.constant 0 : index
    %c0_2 = arith.constant 0 : index
    %1 = vector.load %arg2[%c0_1, %c0_2] : memref<16x128xf32, #tpu.memory_space<vmem>>, vector<16x128xf32>
    %c0_3 = arith.constant 0 : index
    %c0_4 = arith.constant 0 : index
    %2 = vector.load %arg3[%c0_3, %c0_4] : memref<1x128xf32, #tpu.memory_space<vmem>>, vector<1x128xf32>
    %cst = arith.constant dense<0.000000e+00> : vector<8x128xf32>
    %3 = tpu.matmul %0, %1, %cst {dimension_numbers = #tpu.dot_dimension_numbers<[1], [0], [0], [1], [0, 0, 1, 1], [], []>} : vector<8x16xf32>, vector<16x128xf32>, vector<8x128xf32> -> vector<8x128xf32>
    %4 = vector.broadcast %2 : vector<1x128xf32> to vector<8x128xf32>
    %5 = arith.addf %3, %4 : vector<8x128xf32>
    %cst_5 = arith.constant 0.000000e+00 : f32
    %6 = vector.broadcast %cst_5 : f32 to vector<8x128xf32>
    %7 = arith.cmpf oge, %5, %6 : vector<8x128xf32>
    %cst_6 = arith.constant 0.00999999977 : f32
    %8 = vector.broadcast %cst_6 : f32 to vector<8x128xf32>
    %9 = arith.mulf %8, %5 : vector<8x128xf32>
    %10 = arith.select %7, %5, %9 : vector<8x128xi1>, vector<8x128xf32>
    %c0_7 = arith.constant 0 : index
    %c0_8 = arith.constant 0 : index
    %11 = vector.load %arg4[%c0_7, %c0_8] : memref<128x128xf32, #tpu.memory_space<vmem>>, vector<128x128xf32>
    %c0_9 = arith.constant 0 : index
    %c0_10 = arith.constant 0 : index
    %12 = vector.load %arg5[%c0_9, %c0_10] : memref<1x128xf32, #tpu.memory_space<vmem>>, vector<1x128xf32>
    %cst_11 = arith.constant dense<0.000000e+00> : vector<8x128xf32>
    %13 = tpu.matmul %10, %11, %cst_11 {dimension_numbers = #tpu.dot_dimension_numbers<[1], [0], [0], [1], [0, 0, 1, 1], [], []>} : vector<8x128xf32>, vector<128x128xf32>, vector<8x128xf32> -> vector<8x128xf32>
    %14 = vector.broadcast %12 : vector<1x128xf32> to vector<8x128xf32>
    %15 = arith.addf %13, %14 : vector<8x128xf32>
    %cst_12 = arith.constant 0.000000e+00 : f32
    %16 = vector.broadcast %cst_12 : f32 to vector<8x128xf32>
    %17 = arith.cmpf oge, %15, %16 : vector<8x128xf32>
    %cst_13 = arith.constant 0.00999999977 : f32
    %18 = vector.broadcast %cst_13 : f32 to vector<8x128xf32>
    %19 = arith.mulf %18, %15 : vector<8x128xf32>
    %20 = arith.select %17, %15, %19 : vector<8x128xi1>, vector<8x128xf32>
    %c0_14 = arith.constant 0 : index
    %c0_15 = arith.constant 0 : index
    %21 = vector.load %arg6[%c0_14, %c0_15] : memref<128x128xf32, #tpu.memory_space<vmem>>, vector<128x128xf32>
    %c0_16 = arith.constant 0 : index
    %c0_17 = arith.constant 0 : index
    %22 = vector.load %arg7[%c0_16, %c0_17] : memref<1x128xf32, #tpu.memory_space<vmem>>, vector<1x128xf32>
    %cst_18 = arith.constant dense<0.000000e+00> : vector<8x128xf32>
    %23 = tpu.matmul %20, %21, %cst_18 {dimension_numbers = #tpu.dot_dimension_numbers<[1], [0], [0], [1], [0, 0, 1, 1], [], []>} : vector<8x128xf32>, vector<128x128xf32>, vector<8x128xf32> -> vector<8x128xf32>
    %24 = vector.broadcast %22 : vector<1x128xf32> to vector<8x128xf32>
    %25 = arith.addf %23, %24 : vector<8x128xf32>
    %cst_19 = arith.constant 0.000000e+00 : f32
    %26 = vector.broadcast %cst_19 : f32 to vector<8x128xf32>
    %27 = arith.cmpf oge, %25, %26 : vector<8x128xf32>
    %cst_20 = arith.constant 0.00999999977 : f32
    %28 = vector.broadcast %cst_20 : f32 to vector<8x128xf32>
    %29 = arith.mulf %28, %25 : vector<8x128xf32>
    %30 = arith.select %27, %25, %29 : vector<8x128xi1>, vector<8x128xf32>
    %c0_21 = arith.constant 0 : index
    %c0_22 = arith.constant 0 : index
    %31 = vector.load %arg8[%c0_21, %c0_22] : memref<128x8xf32, #tpu.memory_space<vmem>>, vector<128x8xf32>
    %c0_23 = arith.constant 0 : index
    %c0_24 = arith.constant 0 : index
    %32 = vector.load %arg9[%c0_23, %c0_24] : memref<1x8xf32, #tpu.memory_space<vmem>>, vector<1x8xf32>
    %cst_25 = arith.constant dense<0.000000e+00> : vector<8x8xf32>
    %33 = tpu.matmul %30, %31, %cst_25 {dimension_numbers = #tpu.dot_dimension_numbers<[1], [0], [0], [1], [0, 0, 1, 1], [], []>} : vector<8x128xf32>, vector<128x8xf32>, vector<8x8xf32> -> vector<8x8xf32>
    %34 = vector.broadcast %32 : vector<1x8xf32> to vector<8x8xf32>
    %35 = arith.addf %33, %34 : vector<8x8xf32>
    %c0_26 = arith.constant 0 : index
    %c0_27 = arith.constant 0 : index
    %36 = vector.load %arg10[%c0_26, %c0_27] : memref<8x8xf32, #tpu.memory_space<vmem>>, vector<8x8xf32>
    tpu.vector_store %arg10[%c0_26, %c0_27], %35 {strides = array<i32>} : memref<8x8xf32, #tpu.memory_space<vmem>>, vector<8x8xf32>,
    return
  }
  func.func @transform_0(%arg0: i32) -> (i32, i32) {
    %c0_i32 = arith.constant 0 : i32
    %c0_i32_0 = arith.constant 0 : i32
    return %arg0, %c0_i32 : i32, i32
  }
  func.func @transform_1(%arg0: i32) -> (i32, i32) {
    %c0_i32 = arith.constant 0 : i32
    %c0_i32_0 = arith.constant 0 : i32
    %c0_i32_1 = arith.constant 0 : i32
    return %c0_i32, %c0_i32_0 : i32, i32
  }
  func.func @transform_2(%arg0: i32) -> (i32, i32) {
    %c0_i32 = arith.constant 0 : i32
    %c0_i32_0 = arith.constant 0 : i32
    %c0_i32_1 = arith.constant 0 : i32
    return %c0_i32, %c0_i32_0 : i32, i32
  }
  func.func @transform_3(%arg0: i32) -> (i32, i32) {
    %c0_i32 = arith.constant 0 : i32
    %c0_i32_0 = arith.constant 0 : i32
    %c0_i32_1 = arith.constant 0 : i32
    return %c0_i32, %c0_i32_0 : i32, i32
  }
  func.func @transform_4(%arg0: i32) -> (i32, i32) {
    %c0_i32 = arith.constant 0 : i32
    %c0_i32_0 = arith.constant 0 : i32
    %c0_i32_1 = arith.constant 0 : i32
    return %c0_i32, %c0_i32_0 : i32, i32
  }
  func.func @transform_5(%arg0: i32) -> (i32, i32) {
    %c0_i32 = arith.constant 0 : i32
    %c0_i32_0 = arith.constant 0 : i32
    %c0_i32_1 = arith.constant 0 : i32
    return %c0_i32, %c0_i32_0 : i32, i32
  }
  func.func @transform_6(%arg0: i32) -> (i32, i32) {
    %c0_i32 = arith.constant 0 : i32
    %c0_i32_0 = arith.constant 0 : i32
    %c0_i32_1 = arith.constant 0 : i32
    return %c0_i32, %c0_i32_0 : i32, i32
  }
  func.func @transform_7(%arg0: i32) -> (i32, i32) {
    %c0_i32 = arith.constant 0 : i32
    %c0_i32_0 = arith.constant 0 : i32
    %c0_i32_1 = arith.constant 0 : i32
    return %c0_i32, %c0_i32_0 : i32, i32
  }
  func.func @transform_8(%arg0: i32) -> (i32, i32) {
    %c0_i32 = arith.constant 0 : i32
    %c0_i32_0 = arith.constant 0 : i32
    %c0_i32_1 = arith.constant 0 : i32
    return %c0_i32, %c0_i32_0 : i32, i32
  }
  func.func @transform_9(%arg0: i32) -> (i32, i32) {
    %c0_i32 = arith.constant 0 : i32
    %c0_i32_0 = arith.constant 0 : i32
    return %arg0, %c0_i32 : i32, i32
  }
}

</mosaic_0001>

<llo_original>
// kernel: tpu_custom_call.1
$region0: #{tpu_custom_call.1}
  #allocation0 [shape = 'u32[]', space=smem, size = 0x4, offset = 0x4, fixed_abs, tag = 'smem constant byte address 0x4 - core index']
  #allocation1 [shape = 'u32[144,128]{1,0:T(1,128)}', space=vmem, size = 0x12000, scoped, tag = 'internal scratch']
  %s0 = inlined_call_operand.hbm [shape: f32[8,16], index: 0, kind: input, shape index: {}]
  %s1 = inlined_call_operand.vmem [shape: f32[16,128], index: 1, kind: input, shape index: {}]
  %s2 = inlined_call_operand.vmem [shape: f32[1,128], index: 2, kind: input, shape index: {}]
  %s3 = inlined_call_operand.vmem [shape: f32[128,128], index: 3, kind: input, shape index: {}]
  %s4 = inlined_call_operand.vmem [shape: f32[1,128], index: 4, kind: input, shape index: {}]
  %s5 = inlined_call_operand.hbm [shape: f32[128,128], index: 5, kind: input, shape index: {}]
  %s6 = inlined_call_operand.vmem [shape: f32[1,128], index: 6, kind: input, shape index: {}]
  %s7 = inlined_call_operand.vmem [shape: f32[128,8], index: 7, kind: input, shape index: {}]
  %s8 = inlined_call_operand.vmem [shape: f32[1,8], index: 8, kind: input, shape index: {}]
  %s9 = inlined_call_operand.hbm [shape: f32[8,8], index: 9, kind: output, shape index: {}]
  %s10 = sld [smem:[#allocation0]]
  $region54: #{tpu_custom_call.1} parent=0
    _
  %s12 = ssub.s32 1, %s10
  %s13 = scalar_select 0, %s12, %s10
  $region1: #{tpu_custom_call.1} parent=0
    #allocation2 [shape = 'u8[4096]{0}', space=vmem, size = 0x1000, scoped, tag = 'input window, operand 0, single buffered']
    #allocation3 [shape = 's32[1]{0}', space=sflag, size = 0x4, scoped, tag = 'scoped memory for tpu_custom_call.1']
    #allocation4 [shape = 's32[1]{0}', space=sflag, size = 0x4, scoped, tag = 'scoped memory for tpu_custom_call.1']
    #allocation5 [shape = 'u8[65536]{0}', space=vmem, size = 0x10000, scoped, tag = 'input window, operand 5, single buffered']
    #allocation6 [shape = 's32[1]{0}', space=sflag, size = 0x4, scoped, tag = 'scoped memory for tpu_custom_call.1']
    #allocation7 [shape = 'u8[4096]{0}', space=vmem, size = 0x1000, scoped, tag = 'output window, operand 0, single buffered']
    %14 = vsyncpa [#allocation3], 0
    %15 = vsyncpa [#allocation6], 0
    %16 = vsyncpa [#allocation4], 0
    // Predicated region
    $region2: #{tpu_custom_call.1} parent=1 // pred_check
      _
    $region3: #{tpu_custom_call.1} parent=1 // pred_check_branch
      %18 = sbr.rel (0) target = $region5
    $region4: #{tpu_custom_call.1} parent=1 // pred_region
      %s20 = ssub.s32 128, 128
      %21 = vsyncadd [#allocation3], %s20
      %s23 = sshll.u32 [#allocation2], 4
      %s24 = int_to_ptr.vmem [resolvable:$true] %s23
      %26 = dma.hbm_to_vmem [thread:$0]  %s0, 128, %s24, [#allocation3]
    $region5: #{tpu_custom_call.1} parent=1 // pred_fallthru
      _
    // Predicated region
    $region6: #{tpu_custom_call.1} parent=1 // pred_check
      _
    $region7: #{tpu_custom_call.1} parent=1 // pred_check_branch
      %28 = sbr.rel (0) target = $region9
    $region8: #{tpu_custom_call.1} parent=1 // pred_region
      _
    $region9: #{tpu_custom_call.1} parent=1 // pred_fallthru
      _
    // Predicated region
    $region10: #{tpu_custom_call.1} parent=1 // pred_check
      _
    $region11: #{tpu_custom_call.1} parent=1 // pred_check_branch
      %30 = sbr.rel (0) target = $region13
    $region12: #{tpu_custom_call.1} parent=1 // pred_region
      _
    $region13: #{tpu_custom_call.1} parent=1 // pred_fallthru
      _
    // Predicated region
    $region14: #{tpu_custom_call.1} parent=1 // pred_check
      _
    $region15: #{tpu_custom_call.1} parent=1 // pred_check_branch
      %32 = sbr.rel (0) target = $region17
    $region16: #{tpu_custom_call.1} parent=1 // pred_region
      _
    $region17: #{tpu_custom_call.1} parent=1 // pred_fallthru
      _
    // Predicated region
    $region18: #{tpu_custom_call.1} parent=1 // pred_check
      _
    $region19: #{tpu_custom_call.1} parent=1 // pred_check_branch
      %34 = sbr.rel (0) target = $region21
    $region20: #{tpu_custom_call.1} parent=1 // pred_region
      _
    $region21: #{tpu_custom_call.1} parent=1 // pred_fallthru
      _
    // Predicated region
    $region22: #{tpu_custom_call.1} parent=1 // pred_check
      _
    $region23: #{tpu_custom_call.1} parent=1 // pred_check_branch
      %36 = sbr.rel (0) target = $region25
    $region24: #{tpu_custom_call.1} parent=1 // pred_region
      %s38 = ssub.s32 2048, 2048
      %39 = vsyncadd [#allocation6], %s38
      %s40 = sshll.u32 [#allocation5], 4
      %s41 = int_to_ptr.vmem [resolvable:$true] %s40
      %46 = dma.hbm_to_vmem [thread:$0]  %s5, 2048, %s41, [#allocation6], 128, 128, 8
    $region25: #{tpu_custom_call.1} parent=1 // pred_fallthru
      _
    // Predicated region
    $region26: #{tpu_custom_call.1} parent=1 // pred_check
      _
    $region27: #{tpu_custom_call.1} parent=1 // pred_check_branch
      %48 = sbr.rel (0) target = $region29
    $region28: #{tpu_custom_call.1} parent=1 // pred_region
      _
    $region29: #{tpu_custom_call.1} parent=1 // pred_fallthru
      _
    // Predicated region
    $region30: #{tpu_custom_call.1} parent=1 // pred_check
      _
    $region31: #{tpu_custom_call.1} parent=1 // pred_check_branch
      %50 = sbr.rel (0) target = $region33
    $region32: #{tpu_custom_call.1} parent=1 // pred_region
      _
    $region33: #{tpu_custom_call.1} parent=1 // pred_fallthru
      _
    // Predicated region
    $region34: #{tpu_custom_call.1} parent=1 // pred_check
      _
    $region35: #{tpu_custom_call.1} parent=1 // pred_check_branch
      %52 = sbr.rel (0) target = $region37
    $region36: #{tpu_custom_call.1} parent=1 // pred_region
      _
    $region37: #{tpu_custom_call.1} parent=1 // pred_fallthru
      _
    // Predicated region
    $region38: #{tpu_custom_call.1} parent=1 // pred_check
      _
    $region39: #{tpu_custom_call.1} parent=1 // pred_check_branch
      %54 = sbr.rel (0) target = $region41
    $region40: #{tpu_custom_call.1} parent=1 // pred_region
      %55 = dma.done [#allocation3], 128
    $region41: #{tpu_custom_call.1} parent=1 // pred_fallthru
      _
    // Predicated region
    $region42: #{tpu_custom_call.1} parent=1 // pred_check
      _
    $region43: #{tpu_custom_call.1} parent=1 // pred_check_branch
      %57 = sbr.rel (0) target = $region45
    $region44: #{tpu_custom_call.1} parent=1 // pred_region
      %58 = dma.done [#allocation6], 2048
    $region45: #{tpu_custom_call.1} parent=1 // pred_fallthru
      _
    %v59 = vld [vmem:[#allocation2] sm:$0xff]
    %v60 = vld [vmem:[%s1] sm:$0xff]
    %v61 = vld [vmem:[%s1 + $0x8] sm:$0xff]
    %v62 = vld [vmem:[%s2] sm:$0x1]
    %v64 = vlaneseq
    %v65 = vshrl.u32 %v64, 7
    %v66 = vsub.s32 0, %v65
    %v67 = vrot.slane %v62, %v66
    %vm69 = vcmask 130048
    %v71 = vsel %vm69, %v59, 0
    %73 = vmatprep.subr.mxu0 0.0
    %74 = vmatpush1.msra.mxu0 %v60
    %75 = vmatprep.subr.mxu0 0.0
    %76 = vmatpush1.msra.mxu0 %v61
    %77 = vmatprep.subr.mxu0 0.0
    %78 = vmatpush1.msra.mxu0 0.0
    %79 = vmatprep.subr.mxu0 0.0
    %80 = vmatpush1.msra.mxu0 0.0
    %81 = vmatprep.subr.mxu0 0.0
    %82 = vmatpush1.msra.mxu0 0.0
    %83 = vmatprep.subr.mxu0 0.0
    %84 = vmatpush1.msra.mxu0 0.0
    %85 = vmatprep.subr.mxu0 0.0
    %86 = vmatpush1.msra.mxu0 0.0
    %87 = vmatprep.subr.mxu0 0.0
    %88 = vmatpush1.msra.mxu0 0.0
    %89 = vmatprep.subr.mxu0 0.0
    %90 = vmatpush1.msra.mxu0 0.0
    %91 = vmatprep.subr.mxu0 0.0
    %92 = vmatpush1.msra.mxu0 0.0
    %93 = vmatprep.subr.mxu0 0.0
    %94 = vmatpush1.msra.mxu0 0.0
    %95 = vmatprep.subr.mxu0 0.0
    %96 = vmatpush1.msra.mxu0 0.0
    %97 = vmatprep.subr.mxu0 0.0
    %98 = vmatpush1.msra.mxu0 0.0
    %99 = vmatprep.subr.mxu0 0.0
    %100 = vmatpush1.msra.mxu0 0.0
    %101 = vmatprep.subr.mxu0 0.0
    %102 = vmatpush1.msra.mxu0 0.0
    %103 = vmatprep.subr.mxu0 0.0
    %104 = vmatpush1.msra.mxu0 0.0
    %105 = vmatprep.subr.mxu0 0.0
    %106 = vmatpush1.msra.mxu0 0.0
    %107 = vmatprep.subr.mxu0 0.0
    %108 = vmatpush1.msra.mxu0 0.0
    %109 = vmatprep.subr.mxu0 0.0
    %110 = vmatpush1.msra.mxu0 0.0
    %111 = vmatprep.subr.mxu0 0.0
    %112 = vmatpush1.msra.mxu0 0.0
    %113 = vmatprep.subr.mxu0 0.0
    %114 = vmatpush1.msra.mxu0 0.0
    %115 = vmatprep.subr.mxu0 0.0
    %116 = vmatpush1.msra.mxu0 0.0
    %117 = vmatprep.subr.mxu0 0.0
    %118 = vmatpush1.msra.mxu0 0.0
    %119 = vmatprep.subr.mxu0 0.0
    %120 = vmatpush1.msra.mxu0 0.0
    %121 = vmatprep.subr.mxu0 0.0
    %122 = vmatpush1.msra.mxu0 0.0
    %123 = vmatprep.subr.mxu0 0.0
    %124 = vmatpush1.msra.mxu0 0.0
    %125 = vmatprep.subr.mxu0 0.0
    %126 = vmatpush1.msra.mxu0 0.0
    %127 = vmatprep.subr.mxu0 0.0
    %128 = vmatpush1.msra.mxu0 0.0
    %129 = vmatprep.subr.mxu0 0.0
    %130 = vmatpush1.msra.mxu0 0.0
    %131 = vmatprep.subr.mxu0 0.0
    %132 = vmatpush1.msra.mxu0 0.0
    %133 = vmatprep.subr.mxu0 0.0
    %134 = vmatpush1.msra.mxu0 0.0
    %135 = vmatprep.subr.mxu0 0.0
    %136 = vmatpush1.msra.mxu0 0.0
    %137 = vmatprep.mubr.f32.mxu0 0.0
    %138 = vmatmul.mubr.f32.gmra.mrb[0].mxu0 %v71
    %v139 = vpop.f32.mrb[0].mxu0
    %v140 = vadd.f32 %v67, %v139
    %v141 = vpop.f32.mrb[0].mxu0
    %142 = vdwg.mxu0
    %vm143 = vcmp.ge.f32.partialorder %v140, 0.0
    %v144 = vmul.f32 %v140, 0.01
    %v145 = vsel %vm143, %v140, %v144
    %v146 = vld [vmem:[%s3] sm:$0xff]
    %v147 = vld [vmem:[%s3 + $0x8] sm:$0xff]
    %v148 = vld [vmem:[%s3 + $0x10] sm:$0xff]
    %v149 = vld [vmem:[%s3 + $0x18] sm:$0xff]
    %v150 = vld [vmem:[%s3 + $0x20] sm:$0xff]
    %v151 = vld [vmem:[%s3 + $0x28] sm:$0xff]
    %v152 = vld [vmem:[%s3 + $0x30] sm:$0xff]
    %v153 = vld [vmem:[%s3 + $0x38] sm:$0xff]
    %v154 = vld [vmem:[%s3 + $0x40] sm:$0xff]
    %v155 = vld [vmem:[%s3 + $0x48] sm:$0xff]
    %v156 = vld [vmem:[%s3 + $0x50] sm:$0xff]
    %v157 = vld [vmem:[%s3 + $0x58] sm:$0xff]
    %v158 = vld [vmem:[%s3 + $0x60] sm:$0xff]
    %v159 = vld [vmem:[%s3 + $0x68] sm:$0xff]
    %v160 = vld [vmem:[%s3 + $0x70] sm:$0xff]
    %v161 = vld [vmem:[%s3 + $0x78] sm:$0xff]
    %v162 = vld [vmem:[%s4] sm:$0x1]
    %v164 = vlaneseq
    %v165 = vshrl.u32 %v164, 7
    %v166 = vsub.s32 0, %v165
    %v167 = vrot.slane %v162, %v166
    %169 = vmatprep.subr.mxu0 0.0
    %170 = vmatpush1.msra.mxu0 %v146
    %171 = vmatprep.subr.mxu0 0.0
    %172 = vmatpush1.msra.mxu0 %v147
    %173 = vmatprep.subr.mxu0 0.0
    %174 = vmatpush1.msra.mxu0 %v148
    %175 = vmatprep.subr.mxu0 0.0
    %176 = vmatpush1.msra.mxu0 %v149
    %177 = vmatprep.subr.mxu0 0.0
    %178 = vmatpush1.msra.mxu0 %v150
    %179 = vmatprep.subr.mxu0 0.0
    %180 = vmatpush1.msra.mxu0 %v151
    %181 = vmatprep.subr.mxu0 0.0
    %182 = vmatpush1.msra.mxu0 %v152
    %183 = vmatprep.subr.mxu0 0.0
    %184 = vmatpush1.msra.mxu0 %v153
    %185 = vmatprep.subr.mxu0 0.0
    %186 = vmatpush1.msra.mxu0 %v154
    %187 = vmatprep.subr.mxu0 0.0
    %188 = vmatpush1.msra.mxu0 %v155
    %189 = vmatprep.subr.mxu0 0.0
    %190 = vmatpush1.msra.mxu0 %v156
    %191 = vmatprep.subr.mxu0 0.0
    %192 = vmatpush1.msra.mxu0 %v157
    %193 = vmatprep.subr.mxu0 0.0
    %194 = vmatpush1.msra.mxu0 %v158
    %195 = vmatprep.subr.mxu0 0.0
    %196 = vmatpush1.msra.mxu0 %v159
    %197 = vmatprep.subr.mxu0 0.0
    %198 = vmatpush1.msra.mxu0 %v160
    %199 = vmatprep.subr.mxu0 0.0
    %200 = vmatpush1.msra.mxu0 %v161
    %201 = vmatprep.subr.mxu0 0.0
    %202 = vmatpush1.msra.mxu0 0.0
    %203 = vmatprep.subr.mxu0 0.0
    %204 = vmatpush1.msra.mxu0 0.0
    %205 = vmatprep.subr.mxu0 0.0
    %206 = vmatpush1.msra.mxu0 0.0
    %207 = vmatprep.subr.mxu0 0.0
    %208 = vmatpush1.msra.mxu0 0.0
    %209 = vmatprep.subr.mxu0 0.0
    %210 = vmatpush1.msra.mxu0 0.0
    %211 = vmatprep.subr.mxu0 0.0
    %212 = vmatpush1.msra.mxu0 0.0
    %213 = vmatprep.subr.mxu0 0.0
    %214 = vmatpush1.msra.mxu0 0.0
    %215 = vmatprep.subr.mxu0 0.0
    %216 = vmatpush1.msra.mxu0 0.0
    %217 = vmatprep.subr.mxu0 0.0
    %218 = vmatpush1.msra.mxu0 0.0
    %219 = vmatprep.subr.mxu0 0.0
    %220 = vmatpush1.msra.mxu0 0.0
    %221 = vmatprep.subr.mxu0 0.0
    %222 = vmatpush1.msra.mxu0 0.0
    %223 = vmatprep.subr.mxu0 0.0
    %224 = vmatpush1.msra.mxu0 0.0
    %225 = vmatprep.subr.mxu0 0.0
    %226 = vmatpush1.msra.mxu0 0.0
    %227 = vmatprep.subr.mxu0 0.0
    %228 = vmatpush1.msra.mxu0 0.0
    %229 = vmatprep.subr.mxu0 0.0
    %230 = vmatpush1.msra.mxu0 0.0
    %231 = vmatprep.subr.mxu0 0.0
    %232 = vmatpush1.msra.mxu0 0.0
    %233 = vmatprep.mubr.f32.mxu0 0.0
    %234 = vmatmul.mubr.f32.gmra.mrb[0].mxu0 %v145
    %v235 = vpop.f32.mrb[0].mxu0
    %v236 = vadd.f32 %v167, %v235
    %v237 = vpop.f32.mrb[0].mxu0
    %238 = vdwg.mxu0
    %vm239 = vcmp.ge.f32.partialorder %v236, 0.0
    %v240 = vmul.f32 %v236, 0.01
    %v241 = vsel %vm239, %v236, %v240
    %v242 = vld [vmem:[#allocation5] sm:$0xff]
    %v243 = vld [vmem:[#allocation5 + $0x8] sm:$0xff]
    %v244 = vld [vmem:[#allocation5 + $0x10] sm:$0xff]
    %v245 = vld [vmem:[#allocation5 + $0x18] sm:$0xff]
    %v246 = vld [vmem:[#allocation5 + $0x20] sm:$0xff]
    %v247 = vld [vmem:[#allocation5 + $0x28] sm:$0xff]
    %v248 = vld [vmem:[#allocation5 + $0x30] sm:$0xff]
    %v249 = vld [vmem:[#allocation5 + $0x38] sm:$0xff]
    %v250 = vld [vmem:[#allocation5 + $0x40] sm:$0xff]
    %v251 = vld [vmem:[#allocation5 + $0x48] sm:$0xff]
    %v252 = vld [vmem:[#allocation5 + $0x50] sm:$0xff]
    %v253 = vld [vmem:[#allocation5 + $0x58] sm:$0xff]
    %v254 = vld [vmem:[#allocation5 + $0x60] sm:$0xff]
    %v255 = vld [vmem:[#allocation5 + $0x68] sm:$0xff]
    %v256 = vld [vmem:[#allocation5 + $0x70] sm:$0xff]
    %v257 = vld [vmem:[#allocation5 + $0x78] sm:$0xff]
    %v258 = vld [vmem:[%s6] sm:$0x1]
    %v260 = vlaneseq
    %v261 = vshrl.u32 %v260, 7
    %v262 = vsub.s32 0, %v261
    %v263 = vrot.slane %v258, %v262
    %265 = vmatprep.subr.mxu0 0.0
    %266 = vmatpush1.msra.mxu0 %v242
    %267 = vmatprep.subr.mxu0 0.0
    %268 = vmatpush1.msra.mxu0 %v243
    %269 = vmatprep.subr.mxu0 0.0
    %270 = vmatpush1.msra.mxu0 %v244
    %271 = vmatprep.subr.mxu0 0.0
    %272 = vmatpush1.msra.mxu0 %v245
    %273 = vmatprep.subr.mxu0 0.0
    %274 = vmatpush1.msra.mxu0 %v246
    %275 = vmatprep.subr.mxu0 0.0
    %276 = vmatpush1.msra.mxu0 %v247
    %277 = vmatprep.subr.mxu0 0.0
    %278 = vmatpush1.msra.mxu0 %v248
    %279 = vmatprep.subr.mxu0 0.0
    %280 = vmatpush1.msra.mxu0 %v249
    %281 = vmatprep.subr.mxu0 0.0
    %282 = vmatpush1.msra.mxu0 %v250
    %283 = vmatprep.subr.mxu0 0.0
    %284 = vmatpush1.msra.mxu0 %v251
    %285 = vmatprep.subr.mxu0 0.0
    %286 = vmatpush1.msra.mxu0 %v252
    %287 = vmatprep.subr.mxu0 0.0
    %288 = vmatpush1.msra.mxu0 %v253
    %289 = vmatprep.subr.mxu0 0.0
    %290 = vmatpush1.msra.mxu0 %v254
    %291 = vmatprep.subr.mxu0 0.0
    %292 = vmatpush1.msra.mxu0 %v255
    %293 = vmatprep.subr.mxu0 0.0
    %294 = vmatpush1.msra.mxu0 %v256
    %295 = vmatprep.subr.mxu0 0.0
    %296 = vmatpush1.msra.mxu0 %v257
    %297 = vmatprep.subr.mxu0 0.0
    %298 = vmatpush1.msra.mxu0 0.0
    %299 = vmatprep.subr.mxu0 0.0
    %300 = vmatpush1.msra.mxu0 0.0
    %301 = vmatprep.subr.mxu0 0.0
    %302 = vmatpush1.msra.mxu0 0.0
    %303 = vmatprep.subr.mxu0 0.0
    %304 = vmatpush1.msra.mxu0 0.0
    %305 = vmatprep.subr.mxu0 0.0
    %306 = vmatpush1.msra.mxu0 0.0
    %307 = vmatprep.subr.mxu0 0.0
    %308 = vmatpush1.msra.mxu0 0.0
    %309 = vmatprep.subr.mxu0 0.0
    %310 = vmatpush1.msra.mxu0 0.0
    %311 = vmatprep.subr.mxu0 0.0
    %312 = vmatpush1.msra.mxu0 0.0
    %313 = vmatprep.subr.mxu0 0.0
    %314 = vmatpush1.msra.mxu0 0.0
    %315 = vmatprep.subr.mxu0 0.0
    %316 = vmatpush1.msra.mxu0 0.0
    %317 = vmatprep.subr.mxu0 0.0
    %318 = vmatpush1.msra.mxu0 0.0
    %319 = vmatprep.subr.mxu0 0.0
    %320 = vmatpush1.msra.mxu0 0.0
    %321 = vmatprep.subr.mxu0 0.0
    %322 = vmatpush1.msra.mxu0 0.0
    %323 = vmatprep.subr.mxu0 0.0
    %324 = vmatpush1.msra.mxu0 0.0
    %325 = vmatprep.subr.mxu0 0.0
    %326 = vmatpush1.msra.mxu0 0.0
    %327 = vmatprep.subr.mxu0 0.0
    %328 = vmatpush1.msra.mxu0 0.0
    %329 = vmatprep.mubr.f32.mxu0 0.0
    %330 = vmatmul.mubr.f32.gmra.mrb[0].mxu0 %v241
    %v331 = vpop.f32.mrb[0].mxu0
    %v332 = vadd.f32 %v263, %v331
    %v333 = vpop.f32.mrb[0].mxu0
    %334 = vdwg.mxu0
    %vm335 = vcmp.ge.f32.partialorder %v332, 0.0
    %v336 = vmul.f32 %v332, 0.01
    %v337 = vsel %vm335, %v332, %v336
    %v338 = vld [vmem:[%s7] sm:$0xff]
    %v339 = vld [vmem:[%s7 + $0x8] sm:$0xff]
    %v340 = vld [vmem:[%s7 + $0x10] sm:$0xff]
    %v341 = vld [vmem:[%s7 + $0x18] sm:$0xff]
    %v342 = vld [vmem:[%s7 + $0x20] sm:$0xff]
    %v343 = vld [vmem:[%s7 + $0x28] sm:$0xff]
    %v344 = vld [vmem:[%s7 + $0x30] sm:$0xff]
    %v345 = vld [vmem:[%s7 + $0x38] sm:$0xff]
    %v346 = vld [vmem:[%s7 + $0x40] sm:$0xff]
    %v347 = vld [vmem:[%s7 + $0x48] sm:$0xff]
    %v348 = vld [vmem:[%s7 + $0x50] sm:$0xff]
    %v349 = vld [vmem:[%s7 + $0x58] sm:$0xff]
    %v350 = vld [vmem:[%s7 + $0x60] sm:$0xff]
    %v351 = vld [vmem:[%s7 + $0x68] sm:$0xff]
    %v352 = vld [vmem:[%s7 + $0x70] sm:$0xff]
    %v353 = vld [vmem:[%s7 + $0x78] sm:$0xff]
    %v354 = vld [vmem:[%s8] sm:$0x1]
    %v356 = vlaneseq
    %v357 = vshrl.u32 %v356, 7
    %v358 = vsub.s32 0, %v357
    %v359 = vrot.slane %v354, %v358
    %361 = vmatprep.subr.mxu0 0.0
    %362 = vmatpush1.msra.mxu0 %v338
    %363 = vmatprep.subr.mxu0 0.0
    %364 = vmatpush1.msra.mxu0 %v339
    %365 = vmatprep.subr.mxu0 0.0
    %366 = vmatpush1.msra.mxu0 %v340
    %367 = vmatprep.subr.mxu0 0.0
    %368 = vmatpush1.msra.mxu0 %v341
    %369 = vmatprep.subr.mxu0 0.0
    %370 = vmatpush1.msra.mxu0 %v342
    %371 = vmatprep.subr.mxu0 0.0
    %372 = vmatpush1.msra.mxu0 %v343
    %373 = vmatprep.subr.mxu0 0.0
    %374 = vmatpush1.msra.mxu0 %v344
    %375 = vmatprep.subr.mxu0 0.0
    %376 = vmatpush1.msra.mxu0 %v345
    %377 = vmatprep.subr.mxu0 0.0
    %378 = vmatpush1.msra.mxu0 %v346
    %379 = vmatprep.subr.mxu0 0.0
    %380 = vmatpush1.msra.mxu0 %v347
    %381 = vmatprep.subr.mxu0 0.0
    %382 = vmatpush1.msra.mxu0 %v348
    %383 = vmatprep.subr.mxu0 0.0
    %384 = vmatpush1.msra.mxu0 %v349
    %385 = vmatprep.subr.mxu0 0.0
    %386 = vmatpush1.msra.mxu0 %v350
    %387 = vmatprep.subr.mxu0 0.0
    %388 = vmatpush1.msra.mxu0 %v351
    %389 = vmatprep.subr.mxu0 0.0
    %390 = vmatpush1.msra.mxu0 %v352
    %391 = vmatprep.subr.mxu0 0.0
    %392 = vmatpush1.msra.mxu0 %v353
    %393 = vmatprep.subr.mxu0 0.0
    %394 = vmatpush1.msra.mxu0 0.0
    %395 = vmatprep.subr.mxu0 0.0
    %396 = vmatpush1.msra.mxu0 0.0
    %397 = vmatprep.subr.mxu0 0.0
    %398 = vmatpush1.msra.mxu0 0.0
    %399 = vmatprep.subr.mxu0 0.0
    %400 = vmatpush1.msra.mxu0 0.0
    %401 = vmatprep.subr.mxu0 0.0
    %402 = vmatpush1.msra.mxu0 0.0
    %403 = vmatprep.subr.mxu0 0.0
    %404 = vmatpush1.msra.mxu0 0.0
    %405 = vmatprep.subr.mxu0 0.0
    %406 = vmatpush1.msra.mxu0 0.0
    %407 = vmatprep.subr.mxu0 0.0
    %408 = vmatpush1.msra.mxu0 0.0
    %409 = vmatprep.subr.mxu0 0.0
    %410 = vmatpush1.msra.mxu0 0.0
    %411 = vmatprep.subr.mxu0 0.0
    %412 = vmatpush1.msra.mxu0 0.0
    %413 = vmatprep.subr.mxu0 0.0
    %414 = vmatpush1.msra.mxu0 0.0
    %415 = vmatprep.subr.mxu0 0.0
    %416 = vmatpush1.msra.mxu0 0.0
    %417 = vmatprep.subr.mxu0 0.0
    %418 = vmatpush1.msra.mxu0 0.0
    %419 = vmatprep.subr.mxu0 0.0
    %420 = vmatpush1.msra.mxu0 0.0
    %421 = vmatprep.subr.mxu0 0.0
    %422 = vmatpush1.msra.mxu0 0.0
    %423 = vmatprep.subr.mxu0 0.0
    %424 = vmatpush1.msra.mxu0 0.0
    %425 = vmatprep.mubr.f32.mxu0 0.0
    %426 = vmatmul.mubr.f32.gmra.mrb[0].mxu0 %v337
    %v427 = vpop.f32.mrb[0].mxu0
    %v428 = vadd.f32 %v359, %v427
    %v429 = vpop.f32.mrb[0].mxu0
    %430 = vdwg.mxu0
    %vm431 = vcmask 64512
    %432 = vst.msk [vmem:[#allocation7] sm:$0xff] %vm431, %v428
    // Predicated region
    $region46: #{tpu_custom_call.1} parent=1 // pred_check
      _
    $region47: #{tpu_custom_call.1} parent=1 // pred_check_branch
      %434 = sbr.rel (0) target = $region49
    $region48: #{tpu_custom_call.1} parent=1 // pred_region
      %s436 = ssub.s32 128, 128
      %437 = vsyncadd [#allocation4], %s436
      %s439 = sshll.u32 [#allocation7], 4
      %s440 = int_to_ptr.vmem [resolvable:$true] %s439
      %442 = dma.vmem_to_hbm [thread:$0]  %s440, 128, %s9, [#allocation4]
    $region49: #{tpu_custom_call.1} parent=1 // pred_fallthru
      _
    // Predicated region
    $region50: #{tpu_custom_call.1} parent=1 // pred_check
      _
    $region51: #{tpu_custom_call.1} parent=1 // pred_check_branch
      %444 = sbr.rel (0) target = $region53
    $region52: #{tpu_custom_call.1} parent=1 // pred_region
      %445 = dma.done [#allocation4], 128
    $region53: #{tpu_custom_call.1} parent=1 // pred_fallthru
      _
    %446 = vsyncpa [#allocation3], 1
    %447 = vsyncpa [#allocation6], 1
    %448 = vsyncpa [#allocation4], 1

</llo_original>
